<compile_context>
chip_gen: v5e
topology: v5e:2x2
jax: 0.10.0
libtpu: 0.0.40
codegen_flags: <defaults>
</compile_context>

<pallas_src>
import jax
import jax.numpy as jnp
from jax.experimental import pallas as pl
from jax.experimental.pallas import tpu as pltpu


# ----------------------------------------------------------------------------
# Kernel 1: prologue — GAT linear transform + per-node attention scalars.
# ----------------------------------------------------------------------------
def _breadth_prologue_kernel(x_ref, w_ref, att_src_ref, att_dst_ref,
                             h_lin_ref, a_src_ref, a_dst_ref):
    h_lin = jnp.dot(x_ref[...], w_ref[...], preferred_element_type=jnp.float32)  # [NP, HP]
    # a_src[j] = <h_lin[j], att_src>, a_dst[i] = <h_lin[i], att_dst>  (VPU mul + lane reduce)
    a_src_ref[...] = jnp.sum(h_lin * att_src_ref[...], axis=-1, keepdims=True)   # [NP, 1]
    a_dst_ref[...] = jnp.sum(h_lin * att_dst_ref[...], axis=-1, keepdims=True)   # [NP, 1]
    h_lin_ref[...] = h_lin.astype(jnp.bfloat16)


# ----------------------------------------------------------------------------
# Kernel 2: main — per row-tile GAT attention + aggregation + fused LSTM step.
# ----------------------------------------------------------------------------
def _geniepath_row_kernel(adj_ref, a_src_ref, a_dst_ref, h_lin_ref, bias_ref,
                          w_lstm_ref, h_ref, c_ref, out_ref, c_out_ref):
    hp = out_ref.shape[-1]

    # ---- Breadth: GATConv(heads=1) attention over incoming edges of this row tile ----
    # logits[i, j] = a_dst[i] + a_src[j]   ([TM,1] + [1,NP] broadcast, VPU only)
    logits = a_dst_ref[...] + a_src_ref[...]                              # [TM, NP]
    lrelu = jnp.where(logits > 0, logits, 0.2 * logits)                   # leaky_relu(0.2)
    masked = jnp.where(adj_ref[...] > 0, lrelu, jnp.float32(-1e30))
    m = jnp.max(masked, axis=-1, keepdims=True)
    p = jnp.exp(masked - m)                       # masked entries underflow to exactly 0
    denom = jnp.sum(p, axis=-1, keepdims=True)    # >= 1 thanks to the self loop
    attn = p * pl.reciprocal(denom, approx=True)

    agg = jnp.dot(attn.astype(jnp.bfloat16), h_lin_ref[...],
                  preferred_element_type=jnp.float32)                     # [TM, HP]
    breadth = jnp.tanh(agg + bias_ref[...])

    # ---- Depth: one bias-free LSTM step, all 4 gates fused into wide matmuls ----
    h_prev = h_ref[...]
    c_prev = c_ref[...]
    gates = (jnp.dot(breadth.astype(jnp.bfloat16), w_lstm_ref[pl.ds(0, hp), :],
                     preferred_element_type=jnp.float32)
             + jnp.dot(h_prev.astype(jnp.bfloat16), w_lstm_ref[pl.ds(hp, hp), :],
                       preferred_element_type=jnp.float32))               # [TM, 4*HP]

    i_g = jax.nn.sigmoid(gates[:, 0 * hp:1 * hp])
    f_g = jax.nn.sigmoid(gates[:, 1 * hp:2 * hp])
    g_g = jnp.tanh(gates[:, 2 * hp:3 * hp])
    o_g = jax.nn.sigmoid(gates[:, 3 * hp:4 * hp])

    c_new = f_g * c_prev + i_g * g_g
    out_ref[...] = o_g * jnp.tanh(c_new)          # written once; reused as h_new
    c_out_ref[...] = c_new


# ----------------------------------------------------------------------------
# Wrapper / glue.
# ----------------------------------------------------------------------------
def _round_up(v, m):
    return (v + m - 1) // m * m


def _choose_row_tile(n, hp, vmem_budget=24 << 20):
    """Largest row tile whose (double-buffered) adj block + residents fit the budget.

    The 24 MiB budget leaves headroom on every generation (v7x has only a 64 MiB
    VMEM / 32 MiB default scoped limit; v5e/v6e have 128 MiB)."""
    n8 = _round_up(n, 8)
    for tm in (512, 256, 128, 64, 32, 16, 8):
        if tm > n8:
            continue
        n_pad = _round_up(n, tm)
        resident = n_pad * hp * 2 + (2 * hp) * (4 * hp) * 2 + n_pad * 8 + hp * 4
        per_step = 2 * (tm * n_pad * 2) + 2 * 6 * tm * hp * 4
        if resident + per_step <= vmem_budget:
            return tm, n_pad
    return 8, _round_up(n, 8)


def geniepath_layer(x, edge_index, h, c, params):
    """x: [N, in_dim]; edge_index: [2, E] (row0=src, row1=dst); h, c: [1, N, hidden]."""
    n, in_dim = x.shape
    hidden = params["lin_w"].shape[1]
    hp = _round_up(hidden, 128)      # lane-dense hidden
    inp = _round_up(in_dim, 128)     # lane-dense input features
    tm, n_pad = _choose_row_tile(n, hp)

    f32 = jnp.float32
    # --- padded inputs / parameters (zero padding is exact for this math) ---
    x_p = jnp.zeros((n_pad, inp), f32).at[:n, :in_dim].set(x)
    lin_w = jnp.zeros((inp, hp), f32).at[:in_dim, :hidden].set(params["lin_w"])
    att_src = jnp.zeros((1, hp), f32).at[:, :hidden].set(params["att_src"])
    att_dst = jnp.zeros((1, hp), f32).at[:, :hidden].set(params["att_dst"].reshape(1, hidden))
    bias = jnp.zeros((1, hp), f32).at[:, :hidden].set(params["bias"])

    # Fused LSTM weight: rows = [breadth ; h_prev] (2*HP), cols = gates i|f|g|o (4*HP).
    w_f = jnp.zeros((2 * hp, 4 * hp), f32)
    for g in range(4):
        w_f = w_f.at[:hidden, g * hp:g * hp + hidden].set(params["w_ih"][g])
        w_f = w_f.at[hp:hp + hidden, g * hp:g * hp + hidden].set(params["w_hh"][g])
    w_f = w_f.astype(jnp.bfloat16)

    h_p = jnp.zeros((n_pad, hp), f32).at[:n, :hidden].set(h[0])
    c_p = jnp.zeros((n_pad, hp), f32).at[:n, :hidden].set(c[0])

    # Dense bf16 adjacency mask (dst-major rows) with self loops (GATConv default).
    # TODO(synk): true sparse scatter-based message passing has no clean Pallas
    # equivalent here; a dense mask is used (same semantics for 0/1 edge weights).
    adj = jnp.zeros((n_pad, n_pad), f32).at[edge_index[1], edge_index[0]].set(1.0)
    adj = jnp.maximum(adj, jnp.eye(n_pad, dtype=f32)).astype(jnp.bfloat16)

    # ---------------- prologue call (whole arrays, O(N*H) work) ----------------
    vmem = pl.BlockSpec(memory_space=pltpu.MemorySpace.VMEM)
    h_lin_bf16, a_src_col, a_dst_col = pl.pallas_call(
        _breadth_prologue_kernel,
        out_shape=(jax.ShapeDtypeStruct((n_pad, hp), jnp.bfloat16),
                   jax.ShapeDtypeStruct((n_pad, 1), f32),
                   jax.ShapeDtypeStruct((n_pad, 1), f32)),
        in_specs=[vmem] * 4,
        out_specs=(vmem, vmem, vmem),
    )(x_p, lin_w, att_src, att_dst)
    a_src_row = a_src_col.reshape(1, n_pad)      # broadcast along lanes in the main kernel

    # ---------------- main row-tiled call ----------------
    grid = (n_pad // tm,)
    in_specs = [
        pl.BlockSpec((tm, n_pad), lambda i: (i, 0)),        # adj row tile (bf16, streamed)
        pl.BlockSpec((1, n_pad), lambda i: (0, 0)),         # a_src row (resident)
        pl.BlockSpec((tm, 1), lambda i: (i, 0)),            # a_dst column tile
        pl.BlockSpec((n_pad, hp), lambda i: (0, 0)),        # h_lin bf16 (resident)
        pl.BlockSpec((1, hp), lambda i: (0, 0)),            # GAT bias (resident)
        pl.BlockSpec((2 * hp, 4 * hp), lambda i: (0, 0)),   # fused LSTM weight (resident)
        pl.BlockSpec((tm, hp), lambda i: (i, 0)),           # h_prev tile
        pl.BlockSpec((tm, hp), lambda i: (i, 0)),           # c_prev tile
    ]
    out_specs = (
        pl.BlockSpec((tm, hp), lambda i: (i, 0)),           # h_new (also the layer output)
        pl.BlockSpec((tm, hp), lambda i: (i, 0)),           # c_new
    )
    out_p, c_new_p = pl.pallas_call(
        _geniepath_row_kernel,
        out_shape=(jax.ShapeDtypeStruct((n_pad, hp), f32),
                   jax.ShapeDtypeStruct((n_pad, hp), f32)),
        grid=grid,
        in_specs=in_specs,
        out_specs=out_specs,
        compiler_params=pltpu.CompilerParams(
            dimension_semantics=("parallel",),      # shards row tiles across TCs on v7x
            vmem_limit_bytes=48 * 1024 * 1024),
    )(adj, a_src_row, a_dst_col, h_lin_bf16, bias, w_f, h_p, c_p)

    out = out_p[:n, :hidden]
    c_out = c_new_p[:n, :hidden]
    return out, (out[None], c_out[None])    # h_new == layer output (single LSTM step)


# ----------------------------------------------------------------------------
# Parameters + pure-JAX reference (validation).
# ----------------------------------------------------------------------------
def init_params(key, in_dim, hidden):
    ks = jax.random.split(key, 5)
    lin_w = 0.1 * jax.random.normal(ks[0], (in_dim, hidden), jnp.float32)      # GAT linear (no bias)
    att_src = 0.1 * jax.random.normal(ks[1], (1, hidden), jnp.float32)         # row vector
    att_dst = 0.1 * jax.random.normal(ks[2], (hidden, 1), jnp.float32)         # column vector
    bias = 0.05 * jax.random.normal(jax.random.fold_in(ks[2], 7), (1, hidden), jnp.float32)
    # torch.nn.LSTM weights: weight_ih_l0 [4H, H], weight_hh_l0 [4H, H]; gate order i,f,g,o.
    w_ih = 0.1 * jax.random.normal(ks[3], (4 * hidden, hidden), jnp.float32)
    w_hh = 0.1 * jax.random.normal(ks[4], (4 * hidden, hidden), jnp.float32)
    # Per-gate transposed form [4, in, H] for right-multiplication.
    w_ih_k = jnp.transpose(w_ih.reshape(4, hidden, hidden), (0, 2, 1))
    w_hh_k = jnp.transpose(w_hh.reshape(4, hidden, hidden), (0, 2, 1))
    return dict(lin_w=lin_w, att_src=att_src, att_dst=att_dst, bias=bias,
                w_ih=w_ih_k, w_hh=w_hh_k)


def geniepath_reference(x, edge_index, h, c, params):
    n = x.shape[0]
    adj = jnp.zeros((n, n), jnp.float32).at[edge_index[1], edge_index[0]].set(1.0)
    adj = jnp.maximum(adj, jnp.eye(n, dtype=jnp.float32))
    h_lin = x @ params["lin_w"]
    a_src = jnp.sum(h_lin * params["att_src"], axis=-1)          # (N,)
    a_dst = h_lin @ params["att_dst"]                            # (N, 1)
    logits = a_dst + a_src[None, :]
    lrelu = jnp.where(logits > 0, logits, 0.2 * logits)
    masked = jnp.where(adj > 0, lrelu, -1e30)
    m = jnp.max(masked, axis=-1, keepdims=True)
    p = jnp.exp(masked - m) * adj
    attn = p / jnp.sum(p, axis=-1, keepdims=True)
    breadth = jnp.tanh(attn @ h_lin + params["bias"])
    h0, c0 = h[0], c[0]
    g = [breadth @ params["w_ih"][k] + h0 @ params["w_hh"][k] for k in range(4)]
    i_g, f_g = jax.nn.sigmoid(g[0]), jax.nn.sigmoid(g[1])
    g_g, o_g = jnp.tanh(g[2]), jax.nn.sigmoid(g[3])
    c1 = f_g * c0 + i_g * g_g
    h1 = o_g * jnp.tanh(c1)
    return h1, (h1[None], c1[None])


if __name__ == "__main__":
    N, IN_DIM, HIDDEN, E = 48, 16, 32, 160

    key = jax.random.PRNGKey(0)
    kx, ks, kd, kh, kc, kp = jax.random.split(key, 6)
    x = jax.random.normal(kx, (N, IN_DIM), jnp.float32)
    src = jax.random.randint(ks, (E,), 0, N)
    dst = jax.random.randint(kd, (E,), 0, N)
    edge_index = jnp.stack([src, dst]).astype(jnp.int32)          # [2, E]
    h = 0.1 * jax.random.normal(kh, (1, N, HIDDEN), jnp.float32)
    c = 0.1 * jax.random.normal(kc, (1, N, HIDDEN), jnp.float32)
    params = init_params(kp, IN_DIM, HIDDEN)

    out, (h_new, c_new) = geniepath_layer(x, edge_index, h, c, params)
    jax.block_until_ready((out, h_new, c_new))

    ref_out, (ref_h, ref_c) = geniepath_reference(x, edge_index, h, c, params)
    assert out.shape == (N, HIDDEN) and h_new.shape == (1, N, HIDDEN) and c_new.shape == (1, N, HIDDEN)
    assert jnp.allclose(out, ref_out, atol=1e-2, rtol=1e-2)
    assert jnp.allclose(h_new, ref_h, atol=1e-2, rtol=1e-2)
    assert jnp.allclose(c_new, ref_c, atol=1e-2, rtol=1e-2)

    print("KERNEL_OK")
</pallas_src>

<mosaic_0001>
module attributes {stable_mosaic.version = 11 : i64} {
  func.func @_breadth_prologue_kernel(%arg0: memref<64x128xf32, #tpu.memory_space<vmem>>, %arg1: memref<128x128xf32, #tpu.memory_space<vmem>>, %arg2: memref<1x128xf32, #tpu.memory_space<vmem>>, %arg3: memref<1x128xf32, #tpu.memory_space<vmem>>, %arg4: memref<64x128xbf16, #tpu.memory_space<vmem>>, %arg5: memref<64x1xf32, #tpu.memory_space<vmem>>, %arg6: memref<64x1xf32, #tpu.memory_space<vmem>>) attributes {dimension_semantics = [], scalar_prefetch = 0 : i64, scratch_operands = 0 : i64, tpu.core_type = #tpu.core_type<tc>} {
    %c0 = arith.constant 0 : index
    %c0_0 = arith.constant 0 : index
    %0 = vector.load %arg0[%c0, %c0_0] : memref<64x128xf32, #tpu.memory_space<vmem>>, vector<64x128xf32>
    %c0_1 = arith.constant 0 : index
    %c0_2 = arith.constant 0 : index
    %1 = vector.load %arg1[%c0_1, %c0_2] : memref<128x128xf32, #tpu.memory_space<vmem>>, vector<128x128xf32>
    %cst = arith.constant dense<0.000000e+00> : vector<64x128xf32>
    %2 = tpu.matmul %0, %1, %cst {dimension_numbers = #tpu.dot_dimension_numbers<[1], [0], [0], [1], [0, 0, 1, 1], [], []>} : vector<64x128xf32>, vector<128x128xf32>, vector<64x128xf32> -> vector<64x128xf32>
    %c0_3 = arith.constant 0 : index
    %c0_4 = arith.constant 0 : index
    %3 = vector.load %arg2[%c0_3, %c0_4] : memref<1x128xf32, #tpu.memory_space<vmem>>, vector<1x128xf32>
    %4 = vector.broadcast %3 : vector<1x128xf32> to vector<64x128xf32>
    %5 = arith.mulf %2, %4 : vector<64x128xf32>
    %cst_5 = arith.constant dense<0.000000e+00> : vector<64xf32>
    %6 = vector.multi_reduction <add>, %5, %cst_5 [1] : vector<64x128xf32> to vector<64xf32>
    %7 = vector.shape_cast %6 : vector<64xf32> to vector<64x1xf32>
    %c0_6 = arith.constant 0 : index
    %c0_7 = arith.constant 0 : index
    %8 = vector.load %arg5[%c0_6, %c0_7] : memref<64x1xf32, #tpu.memory_space<vmem>>, vector<64x1xf32>
    tpu.vector_store %arg5[%c0_6, %c0_7], %7 {strides = array<i32>} : memref<64x1xf32, #tpu.memory_space<vmem>>, vector<64x1xf32>,
    %c0_8 = arith.constant 0 : index
    %c0_9 = arith.constant 0 : index
    %9 = vector.load %arg3[%c0_8, %c0_9] : memref<1x128xf32, #tpu.memory_space<vmem>>, vector<1x128xf32>
    %10 = vector.broadcast %9 : vector<1x128xf32> to vector<64x128xf32>
    %11 = arith.mulf %2, %10 : vector<64x128xf32>
    %cst_10 = arith.constant dense<0.000000e+00> : vector<64xf32>
    %12 = vector.multi_reduction <add>, %11, %cst_10 [1] : vector<64x128xf32> to vector<64xf32>
    %13 = vector.shape_cast %12 : vector<64xf32> to vector<64x1xf32>
    %c0_11 = arith.constant 0 : index
    %c0_12 = arith.constant 0 : index
    %14 = vector.load %arg6[%c0_11, %c0_12] : memref<64x1xf32, #tpu.memory_space<vmem>>, vector<64x1xf32>
    tpu.vector_store %arg6[%c0_11, %c0_12], %13 {strides = array<i32>} : memref<64x1xf32, #tpu.memory_space<vmem>>, vector<64x1xf32>,
    %15 = arith.truncf %2 : vector<64x128xf32> to vector<64x128xbf16>
    %c0_13 = arith.constant 0 : index
    %c0_14 = arith.constant 0 : index
    %16 = vector.load %arg4[%c0_13, %c0_14] : memref<64x128xbf16, #tpu.memory_space<vmem>>, vector<64x128xbf16>
    tpu.vector_store %arg4[%c0_13, %c0_14], %15 {strides = array<i32>} : memref<64x128xbf16, #tpu.memory_space<vmem>>, vector<64x128xbf16>,
    return
  }
}

</mosaic_0001>

<llo_original>
// kernel: tpu_custom_call.1
$region0: #{tpu_custom_call.1}
  #allocation0 [shape = 'u32[]', space=smem, size = 0x4, offset = 0x4, fixed_abs, tag = 'smem constant byte address 0x4 - core index']
  #allocation1 [shape = 'u32[72,128]{1,0:T(1,128)}', space=vmem, size = 0x9000, scoped, tag = 'internal scratch']
  %s0 = inlined_call_operand.hbm [shape: f32[64,128], index: 0, kind: input, shape index: {}]
  %s1 = inlined_call_operand.hbm [shape: f32[128,128], index: 1, kind: input, shape index: {}]
  %s2 = inlined_call_operand.vmem [shape: f32[1,128], index: 2, kind: input, shape index: {}]
  %s3 = inlined_call_operand.vmem [shape: f32[1,128], index: 3, kind: input, shape index: {}]
  %s4 = inlined_call_operand.hbm [shape: bf16[64,128], index: 4, kind: output, shape index: {0}]
  %s5 = inlined_call_operand.vmem [shape: f32[64,1], index: 5, kind: output, shape index: {1}]
  %s6 = inlined_call_operand.vmem [shape: f32[64,1], index: 6, kind: output, shape index: {2}]
  %7 = xla_tuple %s4, %s5, %s6
  %s8 = sld [smem:[#allocation0]]
  $region50: #{tpu_custom_call.1} parent=0
    _
  %s10 = ssub.s32 1, %s8
  %s11 = scalar_select 0, %s10, %s8
  $region1: #{tpu_custom_call.1} parent=0
    #allocation2 [shape = 'u8[32768]{0}', space=vmem, size = 0x8000, scoped, tag = 'input window, operand 0, single buffered']
    #allocation3 [shape = 's32[1]{0}', space=sflag, size = 0x4, scoped, tag = 'scoped memory for tpu_custom_call.1']
    #allocation4 [shape = 's32[1]{0}', space=sflag, size = 0x4, scoped, tag = 'scoped memory for tpu_custom_call.1']
    #allocation5 [shape = 'u8[65536]{0}', space=vmem, size = 0x10000, scoped, tag = 'input window, operand 1, single buffered']
    #allocation6 [shape = 's32[1]{0}', space=sflag, size = 0x4, scoped, tag = 'scoped memory for tpu_custom_call.1']
    #allocation7 [shape = 'u8[16384]{0}', space=vmem, size = 0x4000, scoped, tag = 'output window, operand 0, single buffered']
    %12 = vsyncpa [#allocation3], 0
    %13 = vsyncpa [#allocation6], 0
    %14 = vsyncpa [#allocation4], 0
    // Predicated region
    $region2: #{tpu_custom_call.1} parent=1 // pred_check
      _
    $region3: #{tpu_custom_call.1} parent=1 // pred_check_branch
      %16 = sbr.rel (0) target = $region5
    $region4: #{tpu_custom_call.1} parent=1 // pred_region
      %18 = vsyncadd [#allocation3], 0
      %s19 = sshll.u32 %s0, 4
      %s20 = int_to_ptr.hbm [resolvable:$true] %s19
      %s21 = sshll.u32 [#allocation2], 4
      %s22 = int_to_ptr.vmem [resolvable:$true] %s21
      %27 = dma.hbm_to_vmem [thread:$0]  %s20, 1024, %s22, [#allocation3], 128, 128, 8
    $region5: #{tpu_custom_call.1} parent=1 // pred_fallthru
      _
    // Predicated region
    $region6: #{tpu_custom_call.1} parent=1 // pred_check
      _
    $region7: #{tpu_custom_call.1} parent=1 // pred_check_branch
      %29 = sbr.rel (0) target = $region9
    $region8: #{tpu_custom_call.1} parent=1 // pred_region
      %31 = vsyncadd [#allocation6], 0
      %s32 = sshll.u32 %s1, 4
      %s33 = int_to_ptr.hbm [resolvable:$true] %s32
      %s34 = sshll.u32 [#allocation5], 4
      %s35 = int_to_ptr.vmem [resolvable:$true] %s34
      %40 = dma.hbm_to_vmem [thread:$0]  %s33, 2048, %s35, [#allocation6], 128, 128, 8
    $region9: #{tpu_custom_call.1} parent=1 // pred_fallthru
      _
    // Predicated region
    $region10: #{tpu_custom_call.1} parent=1 // pred_check
      _
    $region11: #{tpu_custom_call.1} parent=1 // pred_check_branch
      %42 = sbr.rel (0) target = $region13
    $region12: #{tpu_custom_call.1} parent=1 // pred_region
      _
    $region13: #{tpu_custom_call.1} parent=1 // pred_fallthru
      _
    // Predicated region
    $region14: #{tpu_custom_call.1} parent=1 // pred_check
      _
    $region15: #{tpu_custom_call.1} parent=1 // pred_check_branch
      %44 = sbr.rel (0) target = $region17
    $region16: #{tpu_custom_call.1} parent=1 // pred_region
      _
    $region17: #{tpu_custom_call.1} parent=1 // pred_fallthru
      _
    // Predicated region
    $region18: #{tpu_custom_call.1} parent=1 // pred_check
      _
    $region19: #{tpu_custom_call.1} parent=1 // pred_check_branch
      %46 = sbr.rel (0) target = $region21
    $region20: #{tpu_custom_call.1} parent=1 // pred_region
      %48 = dma.done [#allocation3], 1024
    $region21: #{tpu_custom_call.1} parent=1 // pred_fallthru
      _
    // Predicated region
    $region22: #{tpu_custom_call.1} parent=1 // pred_check
      _
    $region23: #{tpu_custom_call.1} parent=1 // pred_check_branch
      %50 = sbr.rel (0) target = $region25
    $region24: #{tpu_custom_call.1} parent=1 // pred_region
      %52 = dma.done [#allocation6], 2048
    $region25: #{tpu_custom_call.1} parent=1 // pred_fallthru
      _
    %v53 = vld [vmem:[#allocation2] sm:$0xff]
    %v54 = vld [vmem:[#allocation2 + $0x8] sm:$0xff]
    %v55 = vld [vmem:[#allocation2 + $0x10] sm:$0xff]
    %v56 = vld [vmem:[#allocation2 + $0x18] sm:$0xff]
    %v57 = vld [vmem:[#allocation2 + $0x20] sm:$0xff]
    %v58 = vld [vmem:[#allocation2 + $0x28] sm:$0xff]
    %v59 = vld [vmem:[#allocation2 + $0x30] sm:$0xff]
    %v60 = vld [vmem:[#allocation2 + $0x38] sm:$0xff]
    %v61 = vld [vmem:[#allocation5] sm:$0xff]
    %v62 = vld [vmem:[#allocation5 + $0x8] sm:$0xff]
    %v63 = vld [vmem:[#allocation5 + $0x10] sm:$0xff]
    %v64 = vld [vmem:[#allocation5 + $0x18] sm:$0xff]
    %v65 = vld [vmem:[#allocation5 + $0x20] sm:$0xff]
    %v66 = vld [vmem:[#allocation5 + $0x28] sm:$0xff]
    %v67 = vld [vmem:[#allocation5 + $0x30] sm:$0xff]
    %v68 = vld [vmem:[#allocation5 + $0x38] sm:$0xff]
    %v69 = vld [vmem:[#allocation5 + $0x40] sm:$0xff]
    %v70 = vld [vmem:[#allocation5 + $0x48] sm:$0xff]
    %v71 = vld [vmem:[#allocation5 + $0x50] sm:$0xff]
    %v72 = vld [vmem:[#allocation5 + $0x58] sm:$0xff]
    %v73 = vld [vmem:[#allocation5 + $0x60] sm:$0xff]
    %v74 = vld [vmem:[#allocation5 + $0x68] sm:$0xff]
    %v75 = vld [vmem:[#allocation5 + $0x70] sm:$0xff]
    %v76 = vld [vmem:[#allocation5 + $0x78] sm:$0xff]
    %77 = vmatpush.msra.mxu0 %v76
    %78 = vmatpush.msra.mxu0 %v75
    %79 = vmatpush.msra.mxu0 %v74
    %80 = vmatpush.msra.mxu0 %v73
    %81 = vmatpush.msra.mxu0 %v72
    %82 = vmatpush.msra.mxu0 %v71
    %83 = vmatpush.msra.mxu0 %v70
    %84 = vmatpush.msra.mxu0 %v69
    %85 = vmatpush.msra.mxu0 %v68
    %86 = vmatpush.msra.mxu0 %v67
    %87 = vmatpush.msra.mxu0 %v66
    %88 = vmatpush.msra.mxu0 %v65
    %89 = vmatpush.msra.mxu0 %v64
    %90 = vmatpush.msra.mxu0 %v63
    %91 = vmatpush.msra.mxu0 %v62
    %92 = vmatpush.msra.mxu0 %v61
    %93 = vmatmul.f32.gmra.mxu0 %v53
    %v94 = vpop.f32.mrf.mxu0
    %v95 = vadd.f32 0.0, %v94
    %96 = vmatmul.f32.gmra.mxu0 %v54
    %v97 = vpop.f32.mrf.mxu0
    %v98 = vadd.f32 0.0, %v97
    %99 = vmatmul.f32.gmra.mxu0 %v55
    %v100 = vpop.f32.mrf.mxu0
    %v101 = vadd.f32 0.0, %v100
    %102 = vmatmul.f32.gmra.mxu0 %v56
    %v103 = vpop.f32.mrf.mxu0
    %v104 = vadd.f32 0.0, %v103
    %105 = vmatmul.f32.gmra.mxu0 %v57
    %v106 = vpop.f32.mrf.mxu0
    %v107 = vadd.f32 0.0, %v106
    %108 = vmatmul.f32.gmra.mxu0 %v58
    %v109 = vpop.f32.mrf.mxu0
    %v110 = vadd.f32 0.0, %v109
    %111 = vmatmul.f32.gmra.mxu0 %v59
    %v112 = vpop.f32.mrf.mxu0
    %v113 = vadd.f32 0.0, %v112
    %114 = vmatmul.f32.gmra.mxu0 %v60
    %v115 = vpop.f32.mrf.mxu0
    %v116 = vadd.f32 0.0, %v115
    %117 = vdwg.mxu0
    %v118 = vld [vmem:[%s2] sm:$0x1]
    %v120 = vperm.slane %v118, 0
    %v122 = vmul.f32 %v95, %v120
    %v123 = vmul.f32 %v98, %v120
    %v124 = vmul.f32 %v101, %v120
    %v125 = vmul.f32 %v104, %v120
    %v126 = vmul.f32 %v107, %v120
    %v127 = vmul.f32 %v110, %v120
    %v128 = vmul.f32 %v113, %v120
    %v129 = vmul.f32 %v116, %v120
    %130 = vadd.xlane.f32.xlu0 %v122
    %v131 = vpop.xlane.xlu0 %130
    %132 = vadd.xlane.f32.xlu0 %v123
    %v133 = vpop.xlane.xlu0 %132
    %134 = vadd.xlane.f32.xlu0 %v124
    %v135 = vpop.xlane.xlu0 %134
    %136 = vadd.xlane.f32.xlu0 %v125
    %v137 = vpop.xlane.xlu0 %136
    %138 = vadd.xlane.f32.xlu0 %v126
    %v139 = vpop.xlane.xlu0 %138
    %140 = vadd.xlane.f32.xlu0 %v127
    %v141 = vpop.xlane.xlu0 %140
    %142 = vadd.xlane.f32.xlu0 %v128
    %v143 = vpop.xlane.xlu0 %142
    %144 = vadd.xlane.f32.xlu0 %v129
    %v145 = vpop.xlane.xlu0 %144
    %vm146 = vcmask 7168
    %147 = vst.msk [vmem:[%s5] sm:$0xff] %vm146, %v131
    %148 = vst.msk [vmem:[%s5 + $0x8] sm:$0xff] %vm146, %v133
    %149 = vst.msk [vmem:[%s5 + $0x10] sm:$0xff] %vm146, %v135
    %150 = vst.msk [vmem:[%s5 + $0x18] sm:$0xff] %vm146, %v137
    %151 = vst.msk [vmem:[%s5 + $0x20] sm:$0xff] %vm146, %v139
    %152 = vst.msk [vmem:[%s5 + $0x28] sm:$0xff] %vm146, %v141
    %153 = vst.msk [vmem:[%s5 + $0x30] sm:$0xff] %vm146, %v143
    %154 = vst.msk [vmem:[%s5 + $0x38] sm:$0xff] %vm146, %v145
    %v155 = vld [vmem:[%s3] sm:$0x1]
    %v157 = vperm.slane %v155, 0
    %v159 = vmul.f32 %v95, %v157
    %v160 = vmul.f32 %v98, %v157
    %v161 = vmul.f32 %v101, %v157
    %v162 = vmul.f32 %v104, %v157
    %v163 = vmul.f32 %v107, %v157
    %v164 = vmul.f32 %v110, %v157
    %v165 = vmul.f32 %v113, %v157
    %v166 = vmul.f32 %v116, %v157
    %167 = vadd.xlane.f32.xlu0 %v159
    %v168 = vpop.xlane.xlu0 %167
    %169 = vadd.xlane.f32.xlu0 %v160
    %v170 = vpop.xlane.xlu0 %169
    %171 = vadd.xlane.f32.xlu0 %v161
    %v172 = vpop.xlane.xlu0 %171
    %173 = vadd.xlane.f32.xlu0 %v162
    %v174 = vpop.xlane.xlu0 %173
    %175 = vadd.xlane.f32.xlu0 %v163
    %v176 = vpop.xlane.xlu0 %175
    %177 = vadd.xlane.f32.xlu0 %v164
    %v178 = vpop.xlane.xlu0 %177
    %179 = vadd.xlane.f32.xlu0 %v165
    %v180 = vpop.xlane.xlu0 %179
    %181 = vadd.xlane.f32.xlu0 %v166
    %v182 = vpop.xlane.xlu0 %181
    %183 = vst.msk [vmem:[%s6] sm:$0xff] %vm146, %v168
    %184 = vst.msk [vmem:[%s6 + $0x8] sm:$0xff] %vm146, %v170
    %185 = vst.msk [vmem:[%s6 + $0x10] sm:$0xff] %vm146, %v172
    %186 = vst.msk [vmem:[%s6 + $0x18] sm:$0xff] %vm146, %v174
    %187 = vst.msk [vmem:[%s6 + $0x20] sm:$0xff] %vm146, %v176
    %188 = vst.msk [vmem:[%s6 + $0x28] sm:$0xff] %vm146, %v178
    %189 = vst.msk [vmem:[%s6 + $0x30] sm:$0xff] %vm146, %v180
    %190 = vst.msk [vmem:[%s6 + $0x38] sm:$0xff] %vm146, %v182
    %v191 = vpack.c.bf16 %v95, %v95
    %v192 = vpack.c.bf16 %v98, %v98
    %v193 = vpack.c.bf16 %v101, %v101
    %v194 = vpack.c.bf16 %v104, %v104
    %v195 = vpack.c.bf16 %v107, %v107
    %v196 = vpack.c.bf16 %v110, %v110
    %v197 = vpack.c.bf16 %v113, %v113
    %v198 = vpack.c.bf16 %v116, %v116
    %199 = vst [vmem:[#allocation7] sm:$0xf] %v191
    %200 = vst [vmem:[#allocation7 + $0x4] sm:$0xf] %v192
    %201 = vst [vmem:[#allocation7 + $0x8] sm:$0xf] %v193
    %202 = vst [vmem:[#allocation7 + $0xc] sm:$0xf] %v194
    %203 = vst [vmem:[#allocation7 + $0x10] sm:$0xf] %v195
    %204 = vst [vmem:[#allocation7 + $0x14] sm:$0xf] %v196
    %205 = vst [vmem:[#allocation7 + $0x18] sm:$0xf] %v197
    %206 = vst [vmem:[#allocation7 + $0x1c] sm:$0xf] %v198
    // Predicated region
    $region26: #{tpu_custom_call.1} parent=1 // pred_check
      _
    $region27: #{tpu_custom_call.1} parent=1 // pred_check_branch
      %208 = sbr.rel (0) target = $region29
    $region28: #{tpu_custom_call.1} parent=1 // pred_region
      %210 = vsyncadd [#allocation4], 0
      %s211 = sshll.u32 [#allocation7], 4
      %s212 = int_to_ptr.vmem [resolvable:$true] %s211
      %s213 = sshll.u32 %s4, 4
      %s214 = int_to_ptr.hbm [resolvable:$true] %s213
      %219 = dma.vmem_to_hbm [thread:$0]  %s212, 512, %s214, [#allocation4], 64, 64, 4
    $region29: #{tpu_custom_call.1} parent=1 // pred_fallthru
      _
    // Predicated region
    $region30: #{tpu_custom_call.1} parent=1 // pred_check
      _
    $region31: #{tpu_custom_call.1} parent=1 // pred_check_branch
      %221 = sbr.rel (0) target = $region33
    $region32: #{tpu_custom_call.1} parent=1 // pred_region
      _
    $region33: #{tpu_custom_call.1} parent=1 // pred_fallthru
      _
    // Predicated region
    $region34: #{tpu_custom_call.1} parent=1 // pred_check
      _
    $region35: #{tpu_custom_call.1} parent=1 // pred_check_branch
      %223 = sbr.rel (0) target = $region37
    $region36: #{tpu_custom_call.1} parent=1 // pred_region
      _
    $region37: #{tpu_custom_call.1} parent=1 // pred_fallthru
      _
    // Predicated region
    $region38: #{tpu_custom_call.1} parent=1 // pred_check
      _
    $region39: #{tpu_custom_call.1} parent=1 // pred_check_branch
      %225 = sbr.rel (0) target = $region41
    $region40: #{tpu_custom_call.1} parent=1 // pred_region
      %227 = dma.done [#allocation4], 512
    $region41: #{tpu_custom_call.1} parent=1 // pred_fallthru
      _
    // Predicated region
    $region42: #{tpu_custom_call.1} parent=1 // pred_check
      _
    $region43: #{tpu_custom_call.1} parent=1 // pred_check_branch
      %229 = sbr.rel (0) target = $region45
    $region44: #{tpu_custom_call.1} parent=1 // pred_region
      _
    $region45: #{tpu_custom_call.1} parent=1 // pred_fallthru
      _
    // Predicated region
    $region46: #{tpu_custom_call.1} parent=1 // pred_check
      _
    $region47: #{tpu_custom_call.1} parent=1 // pred_check_branch
      %231 = sbr.rel (0) target = $region49
    $region48: #{tpu_custom_call.1} parent=1 // pred_region
      _
    $region49: #{tpu_custom_call.1} parent=1 // pred_fallthru
      _
    %232 = vsyncpa [#allocation3], 1
    %233 = vsyncpa [#allocation6], 1
    %234 = vsyncpa [#allocation4], 1

</llo_original>
